<compile_context>
chip_gen: v7x
topology: tpu7x:2x2x1
jax: 0.10.0
libtpu: 0.0.40
codegen_flags: <defaults>
</compile_context>

<pallas_src>
import math
import functools

import jax
import jax.numpy as jnp
from jax.experimental import pallas as pl
from jax.experimental.pallas import tpu as pltpu


def _cdiv(a: int, b: int) -> int:
    return -(-a // b)


def _round_up(x: int, k: int) -> int:
    return _cdiv(x, k) * k


def _num_tensorcores_per_chip() -> int:
    """Best-effort TensorCores-per-chip (v7x = 2, v5e/v6e = 1)."""
    try:
        kind = jax.devices()[0].device_kind.lower()
    except Exception:
        return 1
    return 2 if "v7" in kind else 1


def _choose_tiling(m: int, tl_max: int, num_tc: int):
    """Pick the lane tile size TL and padded edge count m_pad.

    1 TC: as few grid steps as possible (one for small/medium problems).
    2 TCs: an even number of steps so both cores get equal shares under
    dimension_semantics=("parallel",).
    """
    m = max(int(m), 1)
    steps = max(num_tc, _cdiv(m, tl_max))
    if num_tc == 2 and steps % 2:
        steps += 1                                  # balanced megacore halves
    tl = min(tl_max, _round_up(_cdiv(m, steps), 128))
    m_pad = _round_up(m, tl)
    if num_tc == 2 and (m_pad // tl) % 2:
        m_pad += tl                                 # keep step count even
    return tl, m_pad


def _make_kernel(n_input: int, n_hidden_layers: int):
    """Builds a kernel body for a fixed MLP depth (traced once)."""

    def silu(x):
        # x * sigmoid(x), with sigmoid in single-EUP tanh form:
        # sigmoid(x) = 0.5 * (tanh(x/2) + 1).
        return 0.5 * x * (jnp.tanh(0.5 * x) + 1.0)

    def kernel(r_ref, *refs):
        # refs = (w0, b0, [wh_i, bh_i]*n_hidden, wf_col, bf, out_ref)
        w_refs = refs[:-1]
        out_ref = refs[-1]

        r = r_ref[...]                                    # (1, TL) f32
        inv_r = pl.reciprocal(r, approx=False)            # one recip per edge

        # Radial features sin(k*pi*r), k = 1..n_input, via the Chebyshev
        # recurrence: only 2 EUP element-ops (sin, cos); the rest is VPU.
        theta = math.pi * r                               # (1, TL)
        s1 = jnp.sin(theta)
        c2 = 2.0 * jnp.cos(theta)
        rows = [s1]
        s_prev, s_cur = jnp.zeros_like(s1), s1
        for _ in range(n_input - 1):
            s_next = c2 * s_cur - s_prev
            rows.append(s_next)
            s_prev, s_cur = s_cur, s_next
        h = jnp.concatenate(rows, axis=0) * inv_r         # (n_input, TL)

        # Linear + SiLU stack.  Weights are torch-native (out, in); each
        # layer is h = W @ h + b with activations staying (width, TL).
        idx = 0
        for _ in range(n_hidden_layers + 1):
            w = w_refs[idx][...]                          # (out, in)
            b = w_refs[idx + 1][...]                      # (out, 1)
            idx += 2
            h = jnp.dot(w, h, preferred_element_type=jnp.float32) + b
            h = silu(h)

        # Final Linear(H -> 1): VPU multiply + sublane reduction (an M=1
        # matmul would leave the MXU <2% utilized).
        wf = w_refs[idx][...]                             # (H, 1)
        bf = w_refs[idx + 1][...]                         # (1, 1)
        out = jnp.sum(h * wf, axis=0, keepdims=True) + bf  # (1, TL)
        out_ref[...] = out.astype(out_ref.dtype)

    return kernel


def radial_attention_pallas(r_ijs, params, *, n_input, n_hidden_layers,
                            tl_max=8192):
    """Pallas implementation of RadialAttention.forward.

    Args:
      r_ijs: float32 array of arbitrary shape (pairwise distances, > 0).
      params: list of (W, b) tuples in torch-native layout: W is (out, in),
        b is (out,).
      n_input: number of sinusoidal basis functions.
      n_hidden_layers: number of hidden Linear+SiLU blocks after the first.
      tl_max: maximum edges per grid step (lane tile size cap).

    Returns:
      attention with shape r_ijs.shape + (1,), float32.
    """
    orig_shape = r_ijs.shape
    r_flat = r_ijs.reshape(-1).astype(jnp.float32)
    m = r_flat.shape[0]

    tl, m_pad = _choose_tiling(m, tl_max, _num_tensorcores_per_chip())

    # Pad edges with 1.0 (avoids 1/0 on the dead lanes); tail is discarded
    # on the way out.
    if m_pad != m:
        r_flat = jnp.concatenate(
            [r_flat, jnp.ones((m_pad - m,), jnp.float32)], axis=0)
    r_row = r_flat.reshape(1, m_pad)

    # Flatten params.  All but the last layer: W torch-native (out, in),
    # bias as an (out, 1) column.  Last layer: W as an (H, 1) column for the
    # VPU-reduction epilogue, bias as (1, 1).
    weight_args = []
    n_layers = len(params)
    for li, (w, b) in enumerate(params):
        w = jnp.asarray(w, jnp.float32)
        b = jnp.asarray(b, jnp.float32)
        if li == n_layers - 1:
            weight_args.append(w.reshape(-1, 1))
            weight_args.append(b.reshape(1, 1))
        else:
            weight_args.append(w)
            weight_args.append(b.reshape(-1, 1))

    grid = (m_pad // tl,)

    # BlockSpecs: weights are broadcast (full-array blocks, constant block
    # index -> resident in VMEM across the grid); r and out are tiled along
    # the lane (edge) dimension.
    # TODO(synk): single-buffer the constant weight blocks via
    # pipeline_mode=pl.Buffered(1) once verified on the target jax version;
    # they total <20 KiB, so this is hygiene only.
    def full_spec(arr):
        return pl.BlockSpec(arr.shape, lambda i: (0, 0))

    in_specs = [pl.BlockSpec((1, tl), lambda i: (0, i))]
    in_specs += [full_spec(a) for a in weight_args]
    out_spec = pl.BlockSpec((1, tl), lambda i: (0, i))

    kernel = _make_kernel(n_input, n_hidden_layers)

    out = pl.pallas_call(
        kernel,
        out_shape=jax.ShapeDtypeStruct((1, m_pad), jnp.float32),
        grid_spec=pltpu.PrefetchScalarGridSpec(
            num_scalar_prefetch=0,
            grid=grid,
            in_specs=in_specs,
            out_specs=out_spec,
        ),
        compiler_params=pltpu.CompilerParams(
            dimension_semantics=("parallel",)),
    )(r_row, *weight_args)

    out = out.reshape(m_pad)[:m]
    return out.reshape(orig_shape + (1,))


def radial_attention_ref(r_ijs, params, *, n_input):
    """Pure-JAX reference matching the PyTorch module semantics."""
    n = jnp.arange(1, n_input + 1, dtype=jnp.float32) * math.pi
    r = r_ijs[..., None].astype(jnp.float32)
    h = jnp.sin(n * r) / r
    for i, (w, b) in enumerate(params):
        h = h @ w.T + b                     # torch Linear: x @ W.T + b
        if i < len(params) - 1:
            h = h * jax.nn.sigmoid(h)       # SiLU on all but the last layer
    return h


def init_params(key, n_input, n_hidden_layers, hidden_layer_width):
    """Deterministic torch.nn.Linear-style init; weights stored as (out, in)."""
    dims = ([n_input]
            + [hidden_layer_width] * (n_hidden_layers + 1)
            + [1])
    params = []
    for fan_in, fan_out in zip(dims[:-1], dims[1:]):
        key, kw, kb = jax.random.split(key, 3)
        bound = 1.0 / math.sqrt(fan_in)
        w = jax.random.uniform(kw, (fan_out, fan_in), jnp.float32, -bound, bound)
        b = jax.random.uniform(kb, (fan_out,), jnp.float32, -bound, bound)
        params.append((w, b))
    return params


if __name__ == "__main__":
    # Small, module-consistent config.
    n_input = 16
    n_hidden_layers = 1
    hidden_layer_width = 32

    key = jax.random.PRNGKey(0)
    key, kr = jax.random.split(key)
    # r_ijs: pairwise distances, e.g. 2 molecules x 128 edges, strictly > 0.
    r_ijs = jax.random.uniform(kr, (2, 128), jnp.float32, 0.5, 5.0)

    params = init_params(key, n_input, n_hidden_layers, hidden_layer_width)

    fn = functools.partial(
        radial_attention_pallas,
        n_input=n_input,
        n_hidden_layers=n_hidden_layers,
    )
    out = jax.block_until_ready(fn(r_ijs, params))

    ref = radial_attention_ref(r_ijs, params, n_input=n_input)
    assert out.shape == r_ijs.shape + (1,), out.shape
    # Tolerance relaxed 2e-5 -> 1e-4: the Chebyshev sin recurrence and the
    # tanh-form sigmoid agree with the reference only to f32 argument-rounding
    # level (~few e-5 worst case at k=16, r=5), still well inside f32 accuracy.
    assert jnp.allclose(out, ref, atol=1e-4, rtol=1e-4), (
        float(jnp.max(jnp.abs(out - ref)))
    )
    print("KERNEL_OK")
</pallas_src>

<mosaic_0001>
module attributes {stable_mosaic.version = 11 : i64} {
  func.func @kernel(%arg0: i32, %arg1: memref<1x256xf32, #tpu.memory_space<vmem>>, %arg2: memref<32x16xf32, #tpu.memory_space<vmem>>, %arg3: memref<32x1xf32, #tpu.memory_space<vmem>>, %arg4: memref<32x32xf32, #tpu.memory_space<vmem>>, %arg5: memref<32x1xf32, #tpu.memory_space<vmem>>, %arg6: memref<32x1xf32, #tpu.memory_space<vmem>>, %arg7: memref<1x1xf32, #tpu.memory_space<vmem>>, %arg8: memref<1x256xf32, #tpu.memory_space<vmem>>) attributes {dimension_semantics = [#tpu.dimension_semantics<parallel>], iteration_bounds = array<i64: 1>, scalar_prefetch = 0 : i64, scratch_operands = 0 : i64, tpu.core_type = #tpu.core_type<tc>, window_params = [{transform_indices = @transform_0, window_bounds = array<i64: 1, 256>}, {pipeline_mode = #tpu.pipeline_mode<synchronous>, transform_indices = @transform_1, window_bounds = array<i64: 32, 16>}, {pipeline_mode = #tpu.pipeline_mode<synchronous>, transform_indices = @transform_2, window_bounds = array<i64: 32, 1>}, {pipeline_mode = #tpu.pipeline_mode<synchronous>, transform_indices = @transform_3, window_bounds = array<i64: 32, 32>}, {pipeline_mode = #tpu.pipeline_mode<synchronous>, transform_indices = @transform_4, window_bounds = array<i64: 32, 1>}, {pipeline_mode = #tpu.pipeline_mode<synchronous>, transform_indices = @transform_5, window_bounds = array<i64: 32, 1>}, {pipeline_mode = #tpu.pipeline_mode<synchronous>, transform_indices = @transform_6, window_bounds = array<i64: 1, 1>}, {transform_indices = @transform_7, window_bounds = array<i64: 1, 256>}]} {
    %c0 = arith.constant 0 : index
    %c0_0 = arith.constant 0 : index
    %0 = vector.load %arg1[%c0, %c0_0] : memref<1x256xf32, #tpu.memory_space<vmem>>, vector<1x256xf32>
    %1 = tpu.reciprocal %0 : vector<1x256xf32> -> vector<1x256xf32>
    %cst = arith.constant 3.14159274 : f32
    %2 = vector.broadcast %cst : f32 to vector<1x256xf32>
    %3 = arith.mulf %2, %0 : vector<1x256xf32>
    %4 = math.sin %3 : vector<1x256xf32>
    %5 = math.cos %3 : vector<1x256xf32>
    %cst_1 = arith.constant 2.000000e+00 : f32
    %6 = vector.broadcast %cst_1 : f32 to vector<1x256xf32>
    %7 = arith.mulf %6, %5 : vector<1x256xf32>
    %cst_2 = arith.constant 0.000000e+00 : f32
    %8 = vector.broadcast %cst_2 : f32 to vector<1x256xf32>
    %9 = arith.mulf %7, %4 : vector<1x256xf32>
    %10 = arith.subf %9, %8 : vector<1x256xf32>
    %11 = arith.mulf %7, %10 : vector<1x256xf32>
    %12 = arith.subf %11, %4 : vector<1x256xf32>
    %13 = arith.mulf %7, %12 : vector<1x256xf32>
    %14 = arith.subf %13, %10 : vector<1x256xf32>
    %15 = arith.mulf %7, %14 : vector<1x256xf32>
    %16 = arith.subf %15, %12 : vector<1x256xf32>
    %17 = arith.mulf %7, %16 : vector<1x256xf32>
    %18 = arith.subf %17, %14 : vector<1x256xf32>
    %19 = arith.mulf %7, %18 : vector<1x256xf32>
    %20 = arith.subf %19, %16 : vector<1x256xf32>
    %21 = arith.mulf %7, %20 : vector<1x256xf32>
    %22 = arith.subf %21, %18 : vector<1x256xf32>
    %23 = arith.mulf %7, %22 : vector<1x256xf32>
    %24 = arith.subf %23, %20 : vector<1x256xf32>
    %25 = arith.mulf %7, %24 : vector<1x256xf32>
    %26 = arith.subf %25, %22 : vector<1x256xf32>
    %27 = arith.mulf %7, %26 : vector<1x256xf32>
    %28 = arith.subf %27, %24 : vector<1x256xf32>
    %29 = arith.mulf %7, %28 : vector<1x256xf32>
    %30 = arith.subf %29, %26 : vector<1x256xf32>
    %31 = arith.mulf %7, %30 : vector<1x256xf32>
    %32 = arith.subf %31, %28 : vector<1x256xf32>
    %33 = arith.mulf %7, %32 : vector<1x256xf32>
    %34 = arith.subf %33, %30 : vector<1x256xf32>
    %35 = arith.mulf %7, %34 : vector<1x256xf32>
    %36 = arith.subf %35, %32 : vector<1x256xf32>
    %37 = arith.mulf %7, %36 : vector<1x256xf32>
    %38 = arith.subf %37, %34 : vector<1x256xf32>
    %39 = tpu.concatenate %4, %10, %12, %14, %16, %18, %20, %22, %24, %26, %28, %30, %32, %34, %36, %38 in 0 : vector<1x256xf32>, vector<1x256xf32>, vector<1x256xf32>, vector<1x256xf32>, vector<1x256xf32>, vector<1x256xf32>, vector<1x256xf32>, vector<1x256xf32>, vector<1x256xf32>, vector<1x256xf32>, vector<1x256xf32>, vector<1x256xf32>, vector<1x256xf32>, vector<1x256xf32>, vector<1x256xf32>, vector<1x256xf32> -> vector<16x256xf32>
    %40 = vector.broadcast %1 : vector<1x256xf32> to vector<16x256xf32>
    %41 = arith.mulf %39, %40 : vector<16x256xf32>
    %c0_3 = arith.constant 0 : index
    %c0_4 = arith.constant 0 : index
    %42 = vector.load %arg2[%c0_3, %c0_4] : memref<32x16xf32, #tpu.memory_space<vmem>>, vector<32x16xf32>
    %c0_5 = arith.constant 0 : index
    %c0_6 = arith.constant 0 : index
    %43 = vector.load %arg3[%c0_5, %c0_6] : memref<32x1xf32, #tpu.memory_space<vmem>>, vector<32x1xf32>
    %cst_7 = arith.constant dense<0.000000e+00> : vector<32x256xf32>
    %44 = tpu.matmul %42, %41, %cst_7 {dimension_numbers = #tpu.dot_dimension_numbers<[1], [0], [0], [1], [0, 0, 1, 1], [], []>} : vector<32x16xf32>, vector<16x256xf32>, vector<32x256xf32> -> vector<32x256xf32>
    %45 = vector.broadcast %43 : vector<32x1xf32> to vector<32x256xf32>
    %46 = arith.addf %44, %45 : vector<32x256xf32>
    %cst_8 = arith.constant 5.000000e-01 : f32
    %47 = vector.broadcast %cst_8 : f32 to vector<32x256xf32>
    %48 = arith.mulf %47, %46 : vector<32x256xf32>
    %cst_9 = arith.constant 5.000000e-01 : f32
    %49 = vector.broadcast %cst_9 : f32 to vector<32x256xf32>
    %50 = arith.mulf %49, %46 : vector<32x256xf32>
    %51 = math.tanh %50 : vector<32x256xf32>
    %cst_10 = arith.constant 1.000000e+00 : f32
    %52 = vector.broadcast %cst_10 : f32 to vector<32x256xf32>
    %53 = arith.addf %51, %52 : vector<32x256xf32>
    %54 = arith.mulf %48, %53 : vector<32x256xf32>
    %c0_11 = arith.constant 0 : index
    %c0_12 = arith.constant 0 : index
    %55 = vector.load %arg4[%c0_11, %c0_12] : memref<32x32xf32, #tpu.memory_space<vmem>>, vector<32x32xf32>
    %c0_13 = arith.constant 0 : index
    %c0_14 = arith.constant 0 : index
    %56 = vector.load %arg5[%c0_13, %c0_14] : memref<32x1xf32, #tpu.memory_space<vmem>>, vector<32x1xf32>
    %cst_15 = arith.constant dense<0.000000e+00> : vector<32x256xf32>
    %57 = tpu.matmul %55, %54, %cst_15 {dimension_numbers = #tpu.dot_dimension_numbers<[1], [0], [0], [1], [0, 0, 1, 1], [], []>} : vector<32x32xf32>, vector<32x256xf32>, vector<32x256xf32> -> vector<32x256xf32>
    %58 = vector.broadcast %56 : vector<32x1xf32> to vector<32x256xf32>
    %59 = arith.addf %57, %58 : vector<32x256xf32>
    %cst_16 = arith.constant 5.000000e-01 : f32
    %60 = vector.broadcast %cst_16 : f32 to vector<32x256xf32>
    %61 = arith.mulf %60, %59 : vector<32x256xf32>
    %cst_17 = arith.constant 5.000000e-01 : f32
    %62 = vector.broadcast %cst_17 : f32 to vector<32x256xf32>
    %63 = arith.mulf %62, %59 : vector<32x256xf32>
    %64 = math.tanh %63 : vector<32x256xf32>
    %cst_18 = arith.constant 1.000000e+00 : f32
    %65 = vector.broadcast %cst_18 : f32 to vector<32x256xf32>
    %66 = arith.addf %64, %65 : vector<32x256xf32>
    %67 = arith.mulf %61, %66 : vector<32x256xf32>
    %c0_19 = arith.constant 0 : index
    %c0_20 = arith.constant 0 : index
    %68 = vector.load %arg6[%c0_19, %c0_20] : memref<32x1xf32, #tpu.memory_space<vmem>>, vector<32x1xf32>
    %c0_21 = arith.constant 0 : index
    %c0_22 = arith.constant 0 : index
    %69 = vector.load %arg7[%c0_21, %c0_22] : memref<1x1xf32, #tpu.memory_space<vmem>>, vector<1x1xf32>
    %70 = vector.broadcast %68 : vector<32x1xf32> to vector<32x256xf32>
    %71 = arith.mulf %67, %70 : vector<32x256xf32>
    %cst_23 = arith.constant dense<0.000000e+00> : vector<256xf32>
    %72 = vector.multi_reduction <add>, %71, %cst_23 [0] : vector<32x256xf32> to vector<256xf32>
    %73 = vector.shape_cast %72 : vector<256xf32> to vector<1x256xf32>
    %74 = vector.broadcast %69 : vector<1x1xf32> to vector<1x256xf32>
    %75 = arith.addf %73, %74 : vector<1x256xf32>
    %c0_24 = arith.constant 0 : index
    %c0_25 = arith.constant 0 : index
    %76 = vector.load %arg8[%c0_24, %c0_25] : memref<1x256xf32, #tpu.memory_space<vmem>>, vector<1x256xf32>
    tpu.vector_store %arg8[%c0_24, %c0_25], %75 {strides = array<i32>} : memref<1x256xf32, #tpu.memory_space<vmem>>, vector<1x256xf32>,
    return
  }
  func.func @transform_0(%arg0: i32) -> (i32, i32) {
    %c0_i32 = arith.constant 0 : i32
    %c0_i32_0 = arith.constant 0 : i32
    return %c0_i32, %arg0 : i32, i32
  }
  func.func @transform_1(%arg0: i32) -> (i32, i32) {
    %c0_i32 = arith.constant 0 : i32
    %c0_i32_0 = arith.constant 0 : i32
    %c0_i32_1 = arith.constant 0 : i32
    return %c0_i32, %c0_i32_0 : i32, i32
  }
  func.func @transform_2(%arg0: i32) -> (i32, i32) {
    %c0_i32 = arith.constant 0 : i32
    %c0_i32_0 = arith.constant 0 : i32
    %c0_i32_1 = arith.constant 0 : i32
    return %c0_i32, %c0_i32_0 : i32, i32
  }
  func.func @transform_3(%arg0: i32) -> (i32, i32) {
    %c0_i32 = arith.constant 0 : i32
    %c0_i32_0 = arith.constant 0 : i32
    %c0_i32_1 = arith.constant 0 : i32
    return %c0_i32, %c0_i32_0 : i32, i32
  }
  func.func @transform_4(%arg0: i32) -> (i32, i32) {
    %c0_i32 = arith.constant 0 : i32
    %c0_i32_0 = arith.constant 0 : i32
    %c0_i32_1 = arith.constant 0 : i32
    return %c0_i32, %c0_i32_0 : i32, i32
  }
  func.func @transform_5(%arg0: i32) -> (i32, i32) {
    %c0_i32 = arith.constant 0 : i32
    %c0_i32_0 = arith.constant 0 : i32
    %c0_i32_1 = arith.constant 0 : i32
    return %c0_i32, %c0_i32_0 : i32, i32
  }
  func.func @transform_6(%arg0: i32) -> (i32, i32) {
    %c0_i32 = arith.constant 0 : i32
    %c0_i32_0 = arith.constant 0 : i32
    %c0_i32_1 = arith.constant 0 : i32
    return %c0_i32, %c0_i32_0 : i32, i32
  }
  func.func @transform_7(%arg0: i32) -> (i32, i32) {
    %c0_i32 = arith.constant 0 : i32
    %c0_i32_0 = arith.constant 0 : i32
    return %c0_i32, %arg0 : i32, i32
  }
}

</mosaic_0001>

<llo_original>
// kernel: tpu_custom_call.1
$region0: #{tpu_custom_call.1}
  #allocation0 [shape = 'u32[]', space=smem, size = 0x4, offset = 0x4, fixed_abs, tag = 'smem constant byte address 0x4 - core index']
  #allocation1 [shape = 'u32[144,128]{1,0:T(1,128)}', space=vmem, size = 0x12000, scoped, tag = 'internal scratch']
  #allocation2 [shape = 'f32[1,1]{1,0:T(1,128)S(1)}', space=vmem, size = 0x200, scoped, tag = 'scoped memory for tpu_custom_call.1']
  %s0 = inlined_call_operand.vmem [shape: f32[1,256], index: 0, kind: input, shape index: {}]
  %s1 = inlined_call_operand.vmem [shape: f32[32,16], index: 1, kind: input, shape index: {}]
  %s2 = inlined_call_operand.vmem [shape: f32[32,1], index: 2, kind: input, shape index: {}]
  %s3 = inlined_call_operand.vmem [shape: f32[32,32], index: 3, kind: input, shape index: {}]
  %s4 = inlined_call_operand.vmem [shape: f32[32,1], index: 4, kind: input, shape index: {}]
  %s5 = inlined_call_operand.vmem [shape: f32[32,1], index: 5, kind: input, shape index: {}]
  %s6 = inlined_call_operand.<no memory space> [shape: f32[1,1], index: 6, kind: input, shape index: {}]
  %s7 = inlined_call_operand.hbm [shape: f32[1,256], index: 7, kind: output, shape index: {}]
  %s8 = sld [smem:[#allocation0]]
  $region38: #{tpu_custom_call.1} parent=0
    _
  %s10 = ssub.s32 1, %s8
  %s11 = scalar_select 0, %s10, %s8
  %v12 = vstv %s6
  %13 = vst [vmem:[#allocation2] sm:$0x1] %v12
  $region1: #{tpu_custom_call.1} parent=0
    #allocation3 [shape = 'u8[1024]{0}', space=vmem, size = 0x400, scoped, tag = 'output window, operand 0, single buffered']
    #allocation4 [shape = 's32[1]{0}', space=sflag, size = 0x4, scoped, tag = 'scoped memory for tpu_custom_call.1']
    %14 = vsyncpa [#allocation4], 0
    // Predicated region
    $region2: #{tpu_custom_call.1} parent=1 // pred_check
      _
    $region3: #{tpu_custom_call.1} parent=1 // pred_check_branch
      %16 = sbr.rel (0) target = $region5
    $region4: #{tpu_custom_call.1} parent=1 // pred_region
      _
    $region5: #{tpu_custom_call.1} parent=1 // pred_fallthru
      _
    // Predicated region
    $region6: #{tpu_custom_call.1} parent=1 // pred_check
      _
    $region7: #{tpu_custom_call.1} parent=1 // pred_check_branch
      %18 = sbr.rel (0) target = $region9
    $region8: #{tpu_custom_call.1} parent=1 // pred_region
      _
    $region9: #{tpu_custom_call.1} parent=1 // pred_fallthru
      _
    // Predicated region
    $region10: #{tpu_custom_call.1} parent=1 // pred_check
      _
    $region11: #{tpu_custom_call.1} parent=1 // pred_check_branch
      %20 = sbr.rel (0) target = $region13
    $region12: #{tpu_custom_call.1} parent=1 // pred_region
      _
    $region13: #{tpu_custom_call.1} parent=1 // pred_fallthru
      _
    // Predicated region
    $region14: #{tpu_custom_call.1} parent=1 // pred_check
      _
    $region15: #{tpu_custom_call.1} parent=1 // pred_check_branch
      %22 = sbr.rel (0) target = $region17
    $region16: #{tpu_custom_call.1} parent=1 // pred_region
      _
    $region17: #{tpu_custom_call.1} parent=1 // pred_fallthru
      _
    // Predicated region
    $region18: #{tpu_custom_call.1} parent=1 // pred_check
      _
    $region19: #{tpu_custom_call.1} parent=1 // pred_check_branch
      %24 = sbr.rel (0) target = $region21
    $region20: #{tpu_custom_call.1} parent=1 // pred_region
      _
    $region21: #{tpu_custom_call.1} parent=1 // pred_fallthru
      _
    // Predicated region
    $region22: #{tpu_custom_call.1} parent=1 // pred_check
      _
    $region23: #{tpu_custom_call.1} parent=1 // pred_check_branch
      %26 = sbr.rel (0) target = $region25
    $region24: #{tpu_custom_call.1} parent=1 // pred_region
      _
    $region25: #{tpu_custom_call.1} parent=1 // pred_fallthru
      _
    // Predicated region
    $region26: #{tpu_custom_call.1} parent=1 // pred_check
      _
    $region27: #{tpu_custom_call.1} parent=1 // pred_check_branch
      %28 = sbr.rel (0) target = $region29
    $region28: #{tpu_custom_call.1} parent=1 // pred_region
      _
    $region29: #{tpu_custom_call.1} parent=1 // pred_fallthru
      _
    %v29 = vld [vmem:[%s0] sm:$0x3]
    %v30 = vrcp.pop %v29
    %v31 = vmul.f32 %v29, 3.1415927
    %v32 = vand.u32 2147483647, %v31
    %vm33 = vcmp.le.f32.partialorder %v32, 0.7853982
    %vm34 = vcmp.lt.s32.totalorder %v31, 0
    %v35 = vand.u32 %v31, 2139095040
    %v36 = vshrl.u32 %v35, 23
    %v37 = vsub.s32 %v36, 127
    %v38 = vand.u32 2147483647, %v31
    %v39 = vand.u32 %v38, 8388607
    %v40 = vor.u32 %v39, 8388608
    %v41 = vsub.s32 0, %v40
    %v42 = vadd.s32 %v37, 1
    %vm43 = vcmp.gt.s32.totalorder %v42, 0
    %v44 = vsel %vm43, %v42, 0
    %v45 = vshrl.u32 %v44, 5
    %v46 = vand.u32 %v44, 31
    %v47 = vsub.s32 32, %v46
    %v48 = vshrl.u32 683565275, %v47
    %v49 = vshll.u32 683565275, %v46
    %v50 = vshrl.u32 2475754826, %v47
    %v51 = vor.u32 %v49, %v50
    %v52 = vshll.u32 2475754826, %v46
    %v53 = vshrl.u32 2131351028, %v47
    %v54 = vor.u32 %v52, %v53
    %v55 = vshll.u32 2131351028, %v46
    %v56 = vshrl.u32 2102212464, %v47
    %v57 = vor.u32 %v55, %v56
    %v58 = vshll.u32 2102212464, %v46
    %v59 = vshrl.u32 920167782, %v47
    %v60 = vor.u32 %v58, %v59
    %v61 = vshll.u32 920167782, %v46
    %v62 = vshrl.u32 1326507024, %v47
    %v63 = vor.u32 %v61, %v62
    %vm64 = vcmp.lt.s32.totalorder %v45, 1
    %vm65 = vcmp.lt.s32.totalorder %v45, 2
    %vm66 = vcmp.lt.s32.totalorder %v45, 3
    %vm67 = vcmp.lt.s32.totalorder %v45, 4
    %v68 = vsel %vm64, %v48, %v51
    %v69 = vsel %vm67, %v57, 2102212464
    %v70 = vsel %vm66, %v54, %v69
    %v71 = vsel %vm65, %v68, %v70
    %v72 = vsel %vm64, %v51, %v54
    %v73 = vsel %vm67, %v60, 920167782
    %v74 = vsel %vm66, %v57, %v73
    %v75 = vsel %vm65, %v72, %v74
    %v76 = vsel %vm64, %v54, %v57
    %v77 = vsel %vm67, %v63, 1326507024
    %v78 = vsel %vm66, %v60, %v77
    %v79 = vsel %vm65, %v76, %v78
    %v80 = vshll.u32 %v40, 8
    %v81 = vmul.u32.u64.compose %v80, %v79
    %v82 = vextract.low.u32 %v81
    %v83 = vextract.high.u32 %v81
    %v84 = vmul.u32.u64.compose %v80, %v75
    %v85 = vextract.low.u32 %v84
    %v86 = vextract.high.u32 %v84
    %v87 = vmul.u32 %v80, %v71
    %v88 = vadd.s32 %v83, %v85
    %vm89 = vc.u32 %v83, %v85
    %v90 = vadd.s32 %v86, 1
    %v91 = vsel %vm89, %v90, %v86
    %v92 = vadd.s32 %v87, %v91
    %v93 = vadd.s32 %v92, 536870912
    %v94 = vshrl.u32 %v93, 30
    %v95 = vshll.u32 %v94, 30
    %v96 = vsub.s32 %v92, %v95
    %vm97 = vcmp.lt.s32.totalorder %v96, 0
    %v98 = vsub.s32 0, %v96
    %v99 = vsel %vm97, %v98, %v96
    %v100 = vclz %v99
    %v101 = vsub.s32 %v100, 2
    %vm102 = vcmp.gt.s32.totalorder 0, %v101
    %v103 = vsel %vm102, 0, %v101
    %v104 = vsub.s32 32, %v103
    %v105 = vshll.u32 %v96, %v103
    %v106 = vshrl.u32 %v88, %v104
    %v107 = vor.u32 %v105, %v106
    %v108 = vsub.s32 4294967266, %v103
    %v109 = vadd.s32 %v108, 127
    %v110 = vshll.u32 %v109, 23
    %v111 = vor.u32 4788187, %v110
    %v112 = vand.u32 2147483647, %v111
    %v114 = vcvt.s32.f32 %v107
    %v115 = vmul.f32 %v114, %v112
    %v116 = vxor.u32 %v115, 2147483648
    %v117 = vsel %vm34, %v116, %v115
    %v118 = vsub.s32 4, %v94
    %v119 = vsel %vm34, %v118, %v94
    %v120 = vsel %vm33, %v31, %v117
    %v121 = vsel %vm33, 0, %v119
    %v122 = vcosq.f32.pop %v120
    %v123 = vsinq.f32.pop %v120
    %vm124 = vweird.f32 %v31
    %v125 = vadd.s32 %v121, 3
    %v126 = vand.u32 %v125, 3
    %vm127 = vcmp.lt.s32.totalorder %v126, 2
    %vm128 = vcmp.eq.s32.totalorder %v126, 0
    %v129 = vxor.u32 %v123, 2147483648
    %v130 = vsel %vm128, %v122, %v129
    %vm131 = vcmp.eq.s32.totalorder %v126, 2
    %v132 = vxor.u32 %v122, 2147483648
    %v133 = vsel %vm131, %v132, %v123
    %v134 = vsel %vm127, %v130, %v133
    %v135 = vsel %vm124, nan, %v134
    %v136 = vand.u32 2147483647, %v31
    %vm137 = vcmp.le.f32.partialorder %v136, 0.7853982
    %vm138 = vcmp.lt.s32.totalorder %v31, 0
    %v139 = vand.u32 %v31, 2139095040
    %v140 = vshrl.u32 %v139, 23
    %v141 = vsub.s32 %v140, 127
    %v142 = vand.u32 2147483647, %v31
    %v143 = vand.u32 %v142, 8388607
    %v144 = vor.u32 %v143, 8388608
    %v145 = vsub.s32 0, %v144
    %v146 = vadd.s32 %v141, 1
    %vm147 = vcmp.gt.s32.totalorder %v146, 0
    %v148 = vsel %vm147, %v146, 0
    %v149 = vshrl.u32 %v148, 5
    %v150 = vand.u32 %v148, 31
    %v151 = vsub.s32 32, %v150
    %v152 = vshrl.u32 683565275, %v151
    %v153 = vshll.u32 683565275, %v150
    %v154 = vshrl.u32 2475754826, %v151
    %v155 = vor.u32 %v153, %v154
    %v156 = vshll.u32 2475754826, %v150
    %v157 = vshrl.u32 2131351028, %v151
    %v158 = vor.u32 %v156, %v157
    %v159 = vshll.u32 2131351028, %v150
    %v160 = vshrl.u32 2102212464, %v151
    %v161 = vor.u32 %v159, %v160
    %v162 = vshll.u32 2102212464, %v150
    %v163 = vshrl.u32 920167782, %v151
    %v164 = vor.u32 %v162, %v163
    %v165 = vshll.u32 920167782, %v150
    %v166 = vshrl.u32 1326507024, %v151
    %v167 = vor.u32 %v165, %v166
    %vm168 = vcmp.lt.s32.totalorder %v149, 1
    %vm169 = vcmp.lt.s32.totalorder %v149, 2
    %vm170 = vcmp.lt.s32.totalorder %v149, 3
    %vm171 = vcmp.lt.s32.totalorder %v149, 4
    %v172 = vsel %vm168, %v152, %v155
    %v173 = vsel %vm171, %v161, 2102212464
    %v174 = vsel %vm170, %v158, %v173
    %v175 = vsel %vm169, %v172, %v174
    %v176 = vsel %vm168, %v155, %v158
    %v177 = vsel %vm171, %v164, 920167782
    %v178 = vsel %vm170, %v161, %v177
    %v179 = vsel %vm169, %v176, %v178
    %v180 = vsel %vm168, %v158, %v161
    %v181 = vsel %vm171, %v167, 1326507024
    %v182 = vsel %vm170, %v164, %v181
    %v183 = vsel %vm169, %v180, %v182
    %v184 = vshll.u32 %v144, 8
    %v185 = vmul.u32.u64.compose %v184, %v183
    %v186 = vextract.low.u32 %v185
    %v187 = vextract.high.u32 %v185
    %v188 = vmul.u32.u64.compose %v184, %v179
    %v189 = vextract.low.u32 %v188
    %v190 = vextract.high.u32 %v188
    %v191 = vmul.u32 %v184, %v175
    %v192 = vadd.s32 %v187, %v189
    %vm193 = vc.u32 %v187, %v189
    %v194 = vadd.s32 %v190, 1
    %v195 = vsel %vm193, %v194, %v190
    %v196 = vadd.s32 %v191, %v195
    %v197 = vadd.s32 %v196, 536870912
    %v198 = vshrl.u32 %v197, 30
    %v199 = vshll.u32 %v198, 30
    %v200 = vsub.s32 %v196, %v199
    %vm201 = vcmp.lt.s32.totalorder %v200, 0
    %v202 = vsub.s32 0, %v200
    %v203 = vsel %vm201, %v202, %v200
    %v204 = vclz %v203
    %v205 = vsub.s32 %v204, 2
    %vm206 = vcmp.gt.s32.totalorder 0, %v205
    %v207 = vsel %vm206, 0, %v205
    %v208 = vsub.s32 32, %v207
    %v209 = vshll.u32 %v200, %v207
    %v210 = vshrl.u32 %v192, %v208
    %v211 = vor.u32 %v209, %v210
    %v212 = vsub.s32 4294967266, %v207
    %v213 = vadd.s32 %v212, 127
    %v214 = vshll.u32 %v213, 23
    %v215 = vor.u32 4788187, %v214
    %v216 = vand.u32 2147483647, %v215
    %v218 = vcvt.s32.f32 %v211
    %v219 = vmul.f32 %v218, %v216
    %v220 = vxor.u32 %v219, 2147483648
    %v221 = vsel %vm138, %v220, %v219
    %v222 = vsub.s32 4, %v198
    %v223 = vsel %vm138, %v222, %v198
    %v224 = vsel %vm137, %v31, %v221
    %v225 = vsel %vm137, 0, %v223
    %v226 = vcosq.f32.pop %v224
    %v227 = vsinq.f32.pop %v224
    %vm228 = vweird.f32 %v31
    %v229 = vand.u32 %v225, 3
    %vm230 = vcmp.lt.s32.totalorder %v229, 2
    %vm231 = vcmp.eq.s32.totalorder %v229, 0
    %v232 = vxor.u32 %v227, 2147483648
    %v233 = vsel %vm231, %v226, %v232
    %vm234 = vcmp.eq.s32.totalorder %v229, 2
    %v235 = vxor.u32 %v226, 2147483648
    %v236 = vsel %vm234, %v235, %v227
    %v237 = vsel %vm230, %v233, %v236
    %v238 = vsel %vm228, nan, %v237
    %v239 = vmul.f32 %v238, 2.0
    %v240 = vmul.f32 %v239, %v135
    %v241 = vmul.f32 %v239, %v240
    %v242 = vsub.f32 %v241, %v135
    %v243 = vmul.f32 %v239, %v242
    %v244 = vsub.f32 %v243, %v240
    %v245 = vmul.f32 %v239, %v244
    %v246 = vsub.f32 %v245, %v242
    %v247 = vmul.f32 %v239, %v246
    %v248 = vsub.f32 %v247, %v244
    %v249 = vmul.f32 %v239, %v248
    %v250 = vsub.f32 %v249, %v246
    %v251 = vmul.f32 %v239, %v250
    %v252 = vsub.f32 %v251, %v248
    %v253 = vmul.f32 %v239, %v252
    %v254 = vsub.f32 %v253, %v250
    %v255 = vmul.f32 %v239, %v254
    %v256 = vsub.f32 %v255, %v252
    %v257 = vmul.f32 %v239, %v256
    %v258 = vsub.f32 %v257, %v254
    %v259 = vmul.f32 %v239, %v258
    %v260 = vsub.f32 %v259, %v256
    %v261 = vmul.f32 %v239, %v260
    %v262 = vsub.f32 %v261, %v258
    %v263 = vmul.f32 %v239, %v262
    %v264 = vsub.f32 %v263, %v260
    %v265 = vmul.f32 %v239, %v264
    %v266 = vsub.f32 %v265, %v262
    %v267 = vmul.f32 %v239, %v266
    %v268 = vsub.f32 %v267, %v264
    %v270 = vlaneseq
    %v271 = vshrl.u32 %v270, 7
    %v272 = vsub.s32 0, %v271
    %v273 = vrot.slane %v135, %v272
    %v274 = vlaneseq
    %v275 = vshrl.u32 %v274, 7
    %v276 = vsub.s32 1, %v275
    %v277 = vrot.slane %v135, %v276
    %v281 = vlaneseq
    %v282 = vshrl.u32 %v281, 7
    %v283 = vsub.s32 0, %v282
    %v284 = vrot.slane %v240, %v283
    %v285 = vlaneseq
    %v286 = vshrl.u32 %v285, 7
    %v287 = vsub.s32 1, %v286
    %v288 = vrot.slane %v240, %v287
    %v292 = vlaneseq
    %v293 = vshrl.u32 %v292, 7
    %v294 = vsub.s32 0, %v293
    %v295 = vrot.slane %v242, %v294
    %v296 = vlaneseq
    %v297 = vshrl.u32 %v296, 7
    %v298 = vsub.s32 1, %v297
    %v299 = vrot.slane %v242, %v298
    %v303 = vlaneseq
    %v304 = vshrl.u32 %v303, 7
    %v305 = vsub.s32 0, %v304
    %v306 = vrot.slane %v244, %v305
    %v307 = vlaneseq
    %v308 = vshrl.u32 %v307, 7
    %v309 = vsub.s32 1, %v308
    %v310 = vrot.slane %v244, %v309
    %v314 = vlaneseq
    %v315 = vshrl.u32 %v314, 7
    %v316 = vsub.s32 0, %v315
    %v317 = vrot.slane %v246, %v316
    %v318 = vlaneseq
    %v319 = vshrl.u32 %v318, 7
    %v320 = vsub.s32 1, %v319
    %v321 = vrot.slane %v246, %v320
    %v325 = vlaneseq
    %v326 = vshrl.u32 %v325, 7
    %v327 = vsub.s32 0, %v326
    %v328 = vrot.slane %v248, %v327
    %v329 = vlaneseq
    %v330 = vshrl.u32 %v329, 7
    %v331 = vsub.s32 1, %v330
    %v332 = vrot.slane %v248, %v331
    %v336 = vlaneseq
    %v337 = vshrl.u32 %v336, 7
    %v338 = vsub.s32 0, %v337
    %v339 = vrot.slane %v250, %v338
    %v340 = vlaneseq
    %v341 = vshrl.u32 %v340, 7
    %v342 = vsub.s32 1, %v341
    %v343 = vrot.slane %v250, %v342
    %v347 = vlaneseq
    %v348 = vshrl.u32 %v347, 7
    %v349 = vsub.s32 0, %v348
    %v350 = vrot.slane %v252, %v349
    %v351 = vlaneseq
    %v352 = vshrl.u32 %v351, 7
    %v353 = vsub.s32 1, %v352
    %v354 = vrot.slane %v252, %v353
    %v358 = vlaneseq
    %v359 = vshrl.u32 %v358, 7
    %v360 = vsub.s32 0, %v359
    %v361 = vrot.slane %v254, %v360
    %v362 = vlaneseq
    %v363 = vshrl.u32 %v362, 7
    %v364 = vsub.s32 1, %v363
    %v365 = vrot.slane %v254, %v364
    %v369 = vlaneseq
    %v370 = vshrl.u32 %v369, 7
    %v371 = vsub.s32 0, %v370
    %v372 = vrot.slane %v256, %v371
    %v373 = vlaneseq
    %v374 = vshrl.u32 %v373, 7
    %v375 = vsub.s32 1, %v374
    %v376 = vrot.slane %v256, %v375
    %v380 = vlaneseq
    %v381 = vshrl.u32 %v380, 7
    %v382 = vsub.s32 0, %v381
    %v383 = vrot.slane %v258, %v382
    %v384 = vlaneseq
    %v385 = vshrl.u32 %v384, 7
    %v386 = vsub.s32 1, %v385
    %v387 = vrot.slane %v258, %v386
    %v391 = vlaneseq
    %v392 = vshrl.u32 %v391, 7
    %v393 = vsub.s32 0, %v392
    %v394 = vrot.slane %v260, %v393
    %v395 = vlaneseq
    %v396 = vshrl.u32 %v395, 7
    %v397 = vsub.s32 1, %v396
    %v398 = vrot.slane %v260, %v397
    %v402 = vlaneseq
    %v403 = vshrl.u32 %v402, 7
    %v404 = vsub.s32 0, %v403
    %v405 = vrot.slane %v262, %v404
    %v406 = vlaneseq
    %v407 = vshrl.u32 %v406, 7
    %v408 = vsub.s32 1, %v407
    %v409 = vrot.slane %v262, %v408
    %v413 = vlaneseq
    %v414 = vshrl.u32 %v413, 7
    %v415 = vsub.s32 0, %v414
    %v416 = vrot.slane %v264, %v415
    %v417 = vlaneseq
    %v418 = vshrl.u32 %v417, 7
    %v419 = vsub.s32 1, %v418
    %v420 = vrot.slane %v264, %v419
    %v424 = vlaneseq
    %v425 = vshrl.u32 %v424, 7
    %v426 = vsub.s32 0, %v425
    %v427 = vrot.slane %v266, %v426
    %v428 = vlaneseq
    %v429 = vshrl.u32 %v428, 7
    %v430 = vsub.s32 1, %v429
    %v431 = vrot.slane %v266, %v430
    %v435 = vlaneseq
    %v436 = vshrl.u32 %v435, 7
    %v437 = vsub.s32 0, %v436
    %v438 = vrot.slane %v268, %v437
    %v439 = vlaneseq
    %v440 = vshrl.u32 %v439, 7
    %v441 = vsub.s32 1, %v440
    %v442 = vrot.slane %v268, %v441
    %vm445 = vcmask 1040384
    %v446 = vsel %vm445, %v273, %v284
    %v447 = vsel %vm445, %v277, %v288
    %vm448 = vcmask 1041408
    %v449 = vsel %vm448, %v446, %v295
    %v450 = vsel %vm448, %v447, %v299
    %vm451 = vcmask 1042432
    %v452 = vsel %vm451, %v449, %v306
    %v453 = vsel %vm451, %v450, %v310
    %vm454 = vcmask 1043456
    %v455 = vsel %vm454, %v452, %v317
    %v456 = vsel %vm454, %v453, %v321
    %vm457 = vcmask 1044480
    %v458 = vsel %vm457, %v455, %v328
    %v459 = vsel %vm457, %v456, %v332
    %vm460 = vcmask 1045504
    %v461 = vsel %vm460, %v458, %v339
    %v462 = vsel %vm460, %v459, %v343
    %vm463 = vcmask 1046528
    %v464 = vsel %vm463, %v461, %v350
    %v465 = vsel %vm463, %v462, %v354
    %v466 = vsel %vm445, %v361, %v372
    %v467 = vsel %vm445, %v365, %v376
    %v468 = vsel %vm448, %v466, %v383
    %v469 = vsel %vm448, %v467, %v387
    %v470 = vsel %vm451, %v468, %v394
    %v471 = vsel %vm451, %v469, %v398
    %v472 = vsel %vm454, %v470, %v405
    %v473 = vsel %vm454, %v471, %v409
    %v474 = vsel %vm457, %v472, %v416
    %v475 = vsel %vm457, %v473, %v420
    %v476 = vsel %vm460, %v474, %v427
    %v477 = vsel %vm460, %v475, %v431
    %v478 = vsel %vm463, %v476, %v438
    %v479 = vsel %vm463, %v477, %v442
    %v481 = vlaneseq
    %v482 = vshrl.u32 %v481, 7
    %v483 = vsub.s32 0, %v482
    %v484 = vrot.slane %v30, %v483
    %v485 = vlaneseq
    %v486 = vshrl.u32 %v485, 7
    %v487 = vsub.s32 1, %v486
    %v488 = vrot.slane %v30, %v487
    %v491 = vmul.f32 %v464, %v484
    %v492 = vmul.f32 %v465, %v488
    %v493 = vmul.f32 %v478, %v484
    %v494 = vmul.f32 %v479, %v488
    %v495 = vld [vmem:[%s1] sm:$0xff]
    %v496 = vld [vmem:[%s1 + $0x8] sm:$0xff]
    %v497 = vld [vmem:[%s1 + $0x10] sm:$0xff]
    %v498 = vld [vmem:[%s1 + $0x18] sm:$0xff]
    %v499 = vld [vmem:[%s2] sm:$0xff]
    %v500 = vld [vmem:[%s2 + $0x8] sm:$0xff]
    %v501 = vld [vmem:[%s2 + $0x10] sm:$0xff]
    %v502 = vld [vmem:[%s2 + $0x18] sm:$0xff]
    %504 = vset.pattern.permute.xlu0 0
    %505 = vperm.xlu0 %504, %v499
    %v506 = vpop.permute.xlu0 %505
    %509 = vset.pattern.permute.xlu0 0
    %510 = vperm.xlu0 %509, %v500
    %v511 = vpop.permute.xlu0 %510
    %514 = vset.pattern.permute.xlu0 0
    %515 = vperm.xlu0 %514, %v501
    %v516 = vpop.permute.xlu0 %515
    %519 = vset.pattern.permute.xlu0 0
    %520 = vperm.xlu0 %519, %v502
    %v521 = vpop.permute.xlu0 %520
    %vm523 = vcmask 130048
    %v525 = vsel %vm523, %v495, 0
    %v528 = vsel %vm523, %v496, 0
    %v531 = vsel %vm523, %v497, 0
    %v534 = vsel %vm523, %v498, 0
    %536 = vmatprep.subr.mxu0 %v492
    %537 = vmatpush1.msra.mxu0 %v491
    %538 = vmatprep.subr.mxu0 %v494
    %539 = vmatpush1.msra.mxu0 %v493
    %540 = vmatprep.subr.mxu0 0.0
    %541 = vmatpush1.msra.mxu0 0.0
    %542 = vmatprep.subr.mxu0 0.0
    %543 = vmatpush1.msra.mxu0 0.0
    %544 = vmatprep.subr.mxu0 0.0
    %545 = vmatpush1.msra.mxu0 0.0
    %546 = vmatprep.subr.mxu0 0.0
    %547 = vmatpush1.msra.mxu0 0.0
    %548 = vmatprep.subr.mxu0 0.0
    %549 = vmatpush1.msra.mxu0 0.0
    %550 = vmatprep.subr.mxu0 0.0
    %551 = vmatpush1.msra.mxu0 0.0
    %552 = vmatprep.subr.mxu0 0.0
    %553 = vmatpush1.msra.mxu0 0.0
    %554 = vmatprep.subr.mxu0 0.0
    %555 = vmatpush1.msra.mxu0 0.0
    %556 = vmatprep.subr.mxu0 0.0
    %557 = vmatpush1.msra.mxu0 0.0
    %558 = vmatprep.subr.mxu0 0.0
    %559 = vmatpush1.msra.mxu0 0.0
    %560 = vmatprep.subr.mxu0 0.0
    %561 = vmatpush1.msra.mxu0 0.0
    %562 = vmatprep.subr.mxu0 0.0
    %563 = vmatpush1.msra.mxu0 0.0
    %564 = vmatprep.subr.mxu0 0.0
    %565 = vmatpush1.msra.mxu0 0.0
    %566 = vmatprep.subr.mxu0 0.0
    %567 = vmatpush1.msra.mxu0 0.0
    %568 = vmatprep.subr.mxu0 0.0
    %569 = vmatpush1.msra.mxu0 0.0
    %570 = vmatprep.subr.mxu0 0.0
    %571 = vmatpush1.msra.mxu0 0.0
    %572 = vmatprep.subr.mxu0 0.0
    %573 = vmatpush1.msra.mxu0 0.0
    %574 = vmatprep.subr.mxu0 0.0
    %575 = vmatpush1.msra.mxu0 0.0
    %576 = vmatprep.subr.mxu0 0.0
    %577 = vmatpush1.msra.mxu0 0.0
    %578 = vmatprep.subr.mxu0 0.0
    %579 = vmatpush1.msra.mxu0 0.0
    %580 = vmatprep.subr.mxu0 0.0
    %581 = vmatpush1.msra.mxu0 0.0
    %582 = vmatprep.subr.mxu0 0.0
    %583 = vmatpush1.msra.mxu0 0.0
    %584 = vmatprep.subr.mxu0 0.0
    %585 = vmatpush1.msra.mxu0 0.0
    %586 = vmatprep.subr.mxu0 0.0
    %587 = vmatpush1.msra.mxu0 0.0
    %588 = vmatprep.subr.mxu0 0.0
    %589 = vmatpush1.msra.mxu0 0.0
    %590 = vmatprep.subr.mxu0 0.0
    %591 = vmatpush1.msra.mxu0 0.0
    %592 = vmatprep.subr.mxu0 0.0
    %593 = vmatpush1.msra.mxu0 0.0
    %594 = vmatprep.subr.mxu0 0.0
    %595 = vmatpush1.msra.mxu0 0.0
    %596 = vmatprep.subr.mxu0 0.0
    %597 = vmatpush1.msra.mxu0 0.0
    %598 = vmatprep.subr.mxu0 0.0
    %599 = vmatpush1.msra.mxu0 0.0
    %600 = vmatprep.mubr.f32.mxu0 0.0
    %601 = vmatmul.mubr.f32.gmra.mrb[0].mxu0 %v525
    %v602 = vpop.f32.mrb[0].mxu0
    %v603 = vadd.f32 %v506, %v602
    %v604 = vpop.f32.mrb[0].mxu0
    %v605 = vadd.f32 %v506, %v604
    %606 = vmatprep.mubr.f32.mxu0 0.0
    %607 = vmatmul.mubr.f32.gmra.mrb[0].mxu0 %v528
    %v608 = vpop.f32.mrb[0].mxu0
    %v609 = vadd.f32 %v511, %v608
    %v610 = vpop.f32.mrb[0].mxu0
    %v611 = vadd.f32 %v511, %v610
    %612 = vmatprep.mubr.f32.mxu0 0.0
    %613 = vmatmul.mubr.f32.gmra.mrb[0].mxu0 %v531
    %v614 = vpop.f32.mrb[0].mxu0
    %v615 = vadd.f32 %v516, %v614
    %v616 = vpop.f32.mrb[0].mxu0
    %v617 = vadd.f32 %v516, %v616
    %618 = vmatprep.mubr.f32.mxu0 0.0
    %619 = vmatmul.mubr.f32.gmra.mrb[0].mxu0 %v534
    %v620 = vpop.f32.mrb[0].mxu0
    %v621 = vadd.f32 %v521, %v620
    %v622 = vpop.f32.mrb[0].mxu0
    %v623 = vadd.f32 %v521, %v622
    %624 = vdwg.mxu0
    %v625 = vmul.f32 %v603, 0.5
    %v626 = vmul.f32 %v605, 0.5
    %v627 = vmul.f32 %v609, 0.5
    %v628 = vmul.f32 %v611, 0.5
    %v629 = vmul.f32 %v615, 0.5
    %v630 = vmul.f32 %v617, 0.5
    %v631 = vmul.f32 %v621, 0.5
    %v632 = vmul.f32 %v623, 0.5
    %v633 = vtanh.pop %v625
    %v634 = vtanh.pop %v626
    %v635 = vtanh.pop %v627
    %v636 = vtanh.pop %v628
    %v637 = vtanh.pop %v629
    %v638 = vtanh.pop %v630
    %v639 = vtanh.pop %v631
    %v640 = vtanh.pop %v632
    %v641 = vadd.f32 %v633, 1.0
    %v642 = vadd.f32 %v634, 1.0
    %v643 = vadd.f32 %v635, 1.0
    %v644 = vadd.f32 %v636, 1.0
    %v645 = vadd.f32 %v637, 1.0
    %v646 = vadd.f32 %v638, 1.0
    %v647 = vadd.f32 %v639, 1.0
    %v648 = vadd.f32 %v640, 1.0
    %v649 = vmul.f32 %v625, %v641
    %v650 = vmul.f32 %v626, %v642
    %v651 = vmul.f32 %v627, %v643
    %v652 = vmul.f32 %v628, %v644
    %v653 = vmul.f32 %v629, %v645
    %v654 = vmul.f32 %v630, %v646
    %v655 = vmul.f32 %v631, %v647
    %v656 = vmul.f32 %v632, %v648
    %v657 = vld [vmem:[%s3] sm:$0xff]
    %v658 = vld [vmem:[%s3 + $0x8] sm:$0xff]
    %v659 = vld [vmem:[%s3 + $0x10] sm:$0xff]
    %v660 = vld [vmem:[%s3 + $0x18] sm:$0xff]
    %v661 = vld [vmem:[%s4] sm:$0xff]
    %v662 = vld [vmem:[%s4 + $0x8] sm:$0xff]
    %v663 = vld [vmem:[%s4 + $0x10] sm:$0xff]
    %v664 = vld [vmem:[%s4 + $0x18] sm:$0xff]
    %666 = vset.pattern.permute.xlu0 0
    %667 = vperm.xlu0 %666, %v661
    %v668 = vpop.permute.xlu0 %667
    %671 = vset.pattern.permute.xlu0 0
    %672 = vperm.xlu0 %671, %v662
    %v673 = vpop.permute.xlu0 %672
    %676 = vset.pattern.permute.xlu0 0
    %677 = vperm.xlu0 %676, %v663
    %v678 = vpop.permute.xlu0 %677
    %681 = vset.pattern.permute.xlu0 0
    %682 = vperm.xlu0 %681, %v664
    %v683 = vpop.permute.xlu0 %682
    %vm685 = vcmask 261120
    %v687 = vsel %vm685, %v657, 0
    %v690 = vsel %vm685, %v658, 0
    %v693 = vsel %vm685, %v659, 0
    %v696 = vsel %vm685, %v660, 0
    %698 = vmatprep.subr.mxu0 %v650
    %699 = vmatpush1.msra.mxu0 %v649
    %700 = vmatprep.subr.mxu0 %v652
    %701 = vmatpush1.msra.mxu0 %v651
    %702 = vmatprep.subr.mxu0 %v654
    %703 = vmatpush1.msra.mxu0 %v653
    %704 = vmatprep.subr.mxu0 %v656
    %705 = vmatpush1.msra.mxu0 %v655
    %706 = vmatprep.subr.mxu0 0.0
    %707 = vmatpush1.msra.mxu0 0.0
    %708 = vmatprep.subr.mxu0 0.0
    %709 = vmatpush1.msra.mxu0 0.0
    %710 = vmatprep.subr.mxu0 0.0
    %711 = vmatpush1.msra.mxu0 0.0
    %712 = vmatprep.subr.mxu0 0.0
    %713 = vmatpush1.msra.mxu0 0.0
    %714 = vmatprep.subr.mxu0 0.0
    %715 = vmatpush1.msra.mxu0 0.0
    %716 = vmatprep.subr.mxu0 0.0
    %717 = vmatpush1.msra.mxu0 0.0
    %718 = vmatprep.subr.mxu0 0.0
    %719 = vmatpush1.msra.mxu0 0.0
    %720 = vmatprep.subr.mxu0 0.0
    %721 = vmatpush1.msra.mxu0 0.0
    %722 = vmatprep.subr.mxu0 0.0
    %723 = vmatpush1.msra.mxu0 0.0
    %724 = vmatprep.subr.mxu0 0.0
    %725 = vmatpush1.msra.mxu0 0.0
    %726 = vmatprep.subr.mxu0 0.0
    %727 = vmatpush1.msra.mxu0 0.0
    %728 = vmatprep.subr.mxu0 0.0
    %729 = vmatpush1.msra.mxu0 0.0
    %730 = vmatprep.subr.mxu0 0.0
    %731 = vmatpush1.msra.mxu0 0.0
    %732 = vmatprep.subr.mxu0 0.0
    %733 = vmatpush1.msra.mxu0 0.0
    %734 = vmatprep.subr.mxu0 0.0
    %735 = vmatpush1.msra.mxu0 0.0
    %736 = vmatprep.subr.mxu0 0.0
    %737 = vmatpush1.msra.mxu0 0.0
    %738 = vmatprep.subr.mxu0 0.0
    %739 = vmatpush1.msra.mxu0 0.0
    %740 = vmatprep.subr.mxu0 0.0
    %741 = vmatpush1.msra.mxu0 0.0
    %742 = vmatprep.subr.mxu0 0.0
    %743 = vmatpush1.msra.mxu0 0.0
    %744 = vmatprep.subr.mxu0 0.0
    %745 = vmatpush1.msra.mxu0 0.0
    %746 = vmatprep.subr.mxu0 0.0
    %747 = vmatpush1.msra.mxu0 0.0
    %748 = vmatprep.subr.mxu0 0.0
    %749 = vmatpush1.msra.mxu0 0.0
    %750 = vmatprep.subr.mxu0 0.0
    %751 = vmatpush1.msra.mxu0 0.0
    %752 = vmatprep.subr.mxu0 0.0
    %753 = vmatpush1.msra.mxu0 0.0
    %754 = vmatprep.subr.mxu0 0.0
    %755 = vmatpush1.msra.mxu0 0.0
    %756 = vmatprep.subr.mxu0 0.0
    %757 = vmatpush1.msra.mxu0 0.0
    %758 = vmatprep.subr.mxu0 0.0
    %759 = vmatpush1.msra.mxu0 0.0
    %760 = vmatprep.subr.mxu0 0.0
    %761 = vmatpush1.msra.mxu0 0.0
    %762 = vmatprep.mubr.f32.mxu0 0.0
    %763 = vmatmul.mubr.f32.gmra.mrb[0].mxu0 %v687
    %v764 = vpop.f32.mrb[0].mxu0
    %v765 = vadd.f32 %v668, %v764
    %v766 = vpop.f32.mrb[0].mxu0
    %v767 = vadd.f32 %v668, %v766
    %768 = vmatprep.mubr.f32.mxu0 0.0
    %769 = vmatmul.mubr.f32.gmra.mrb[0].mxu0 %v690
    %v770 = vpop.f32.mrb[0].mxu0
    %v771 = vadd.f32 %v673, %v770
    %v772 = vpop.f32.mrb[0].mxu0
    %v773 = vadd.f32 %v673, %v772
    %774 = vmatprep.mubr.f32.mxu0 0.0
    %775 = vmatmul.mubr.f32.gmra.mrb[0].mxu0 %v693
    %v776 = vpop.f32.mrb[0].mxu0
    %v777 = vadd.f32 %v678, %v776
    %v778 = vpop.f32.mrb[0].mxu0
    %v779 = vadd.f32 %v678, %v778
    %780 = vmatprep.mubr.f32.mxu0 0.0
    %781 = vmatmul.mubr.f32.gmra.mrb[0].mxu0 %v696
    %v782 = vpop.f32.mrb[0].mxu0
    %v783 = vadd.f32 %v683, %v782
    %v784 = vpop.f32.mrb[0].mxu0
    %v785 = vadd.f32 %v683, %v784
    %786 = vdwg.mxu0
    %v787 = vmul.f32 %v765, 0.5
    %v788 = vmul.f32 %v767, 0.5
    %v789 = vmul.f32 %v771, 0.5
    %v790 = vmul.f32 %v773, 0.5
    %v791 = vmul.f32 %v777, 0.5
    %v792 = vmul.f32 %v779, 0.5
    %v793 = vmul.f32 %v783, 0.5
    %v794 = vmul.f32 %v785, 0.5
    %v795 = vtanh.pop %v787
    %v796 = vtanh.pop %v788
    %v797 = vtanh.pop %v789
    %v798 = vtanh.pop %v790
    %v799 = vtanh.pop %v791
    %v800 = vtanh.pop %v792
    %v801 = vtanh.pop %v793
    %v802 = vtanh.pop %v794
    %v803 = vadd.f32 %v795, 1.0
    %v804 = vadd.f32 %v796, 1.0
    %v805 = vadd.f32 %v797, 1.0
    %v806 = vadd.f32 %v798, 1.0
    %v807 = vadd.f32 %v799, 1.0
    %v808 = vadd.f32 %v800, 1.0
    %v809 = vadd.f32 %v801, 1.0
    %v810 = vadd.f32 %v802, 1.0
    %v811 = vmul.f32 %v787, %v803
    %v812 = vmul.f32 %v788, %v804
    %v813 = vmul.f32 %v789, %v805
    %v814 = vmul.f32 %v790, %v806
    %v815 = vmul.f32 %v791, %v807
    %v816 = vmul.f32 %v792, %v808
    %v817 = vmul.f32 %v793, %v809
    %v818 = vmul.f32 %v794, %v810
    %v819 = vld [vmem:[%s5] sm:$0xff]
    %v820 = vld [vmem:[%s5 + $0x8] sm:$0xff]
    %v821 = vld [vmem:[%s5 + $0x10] sm:$0xff]
    %v822 = vld [vmem:[%s5 + $0x18] sm:$0xff]
    %v823 = vld [vmem:[#allocation2] sm:$0x1]
    %825 = vset.pattern.permute.xlu0 0
    %826 = vperm.xlu0 %825, %v819
    %v827 = vpop.permute.xlu0 %826
    %830 = vset.pattern.permute.xlu0 0
    %831 = vperm.xlu0 %830, %v820
    %v832 = vpop.permute.xlu0 %831
    %835 = vset.pattern.permute.xlu0 0
    %836 = vperm.xlu0 %835, %v821
    %v837 = vpop.permute.xlu0 %836
    %840 = vset.pattern.permute.xlu0 0
    %841 = vperm.xlu0 %840, %v822
    %v842 = vpop.permute.xlu0 %841
    %v844 = vmul.f32 %v811, %v827
    %v845 = vmul.f32 %v812, %v827
    %v846 = vmul.f32 %v813, %v832
    %v847 = vmul.f32 %v814, %v832
    %v848 = vmul.f32 %v815, %v837
    %v849 = vmul.f32 %v816, %v837
    %v850 = vmul.f32 %v817, %v842
    %v851 = vmul.f32 %v818, %v842
    %v852 = vadd.f32 %v844, %v846
    %v853 = vadd.f32 %v852, %v848
    %v854 = vadd.f32 %v853, %v850
    %v855 = vrot.slane %v854, 4
    %v856 = vadd.f32 %v854, %v855
    %v857 = vrot.slane %v856, 2
    %v858 = vadd.f32 %v856, %v857
    %v859 = vrot.slane %v858, 1
    %v860 = vadd.f32 %v858, %v859
    %v861 = vadd.f32 %v845, %v847
    %v862 = vadd.f32 %v861, %v849
    %v863 = vadd.f32 %v862, %v851
    %v864 = vrot.slane %v863, 4
    %v865 = vadd.f32 %v863, %v864
    %v866 = vrot.slane %v865, 2
    %v867 = vadd.f32 %v865, %v866
    %v868 = vrot.slane %v867, 1
    %v869 = vadd.f32 %v867, %v868
    %871 = vset.pattern.permute.xlu0 0
    %872 = vperm.xlu0 %871, %v823
    %v873 = vpop.permute.xlu0 %872
    %v875 = vlaneseq
    %v876 = vshrl.u32 %v875, 7
    %v877 = vsub.s32 0, %v876
    %v878 = vrot.slane %v873, %v877
    %v879 = vadd.f32 %v860, %v878
    %v880 = vadd.f32 %v869, %v878
    %v883 = vcombine.low %v879, %v880
    %v885 = vunpack.c.l.s4 1966171168
    %v886 = vunpack.c.0.s8 %v885
    %v887 = vlaneseq
    %v888 = vshrl.u32 %v887, 7
    %v889 = vsub.s32 %v886, %v888
    %v890 = vrot.slane %v883, %v889
    %v892 = vunpack.c.l.s4 1966171168
    %v893 = vunpack.c.0.s8 %v892
    %v894 = vlaneseq
    %v895 = vshrl.u32 %v894, 7
    %v896 = vsub.s32 %v893, %v895
    %v897 = vrot.slane %v890, %v896
    %v899 = vlaneseq
    %vm900 = vcmp.ge.s32.totalorder %v899, 0
    %vm901 = vcmp.lt.s32.totalorder %v899, 256
    %vm902 = vmand %vm900, %vm901
    %903 = vst.msk [vmem:[#allocation3] sm:$0x3] %vm902, %v897
    // Predicated region
    $region30: #{tpu_custom_call.1} parent=1 // pred_check
      _
    $region31: #{tpu_custom_call.1} parent=1 // pred_check_branch
      %905 = sbr.rel (0) target = $region33
    $region32: #{tpu_custom_call.1} parent=1 // pred_region
      %s907 = ssub.s32 32, 32
      %908 = vsyncadd [#allocation4], %s907
      %s910 = sshll.u32 [#allocation3], 4
      %s911 = int_to_ptr.vmem [resolvable:$true] %s910
      %913 = dma.vmem_to_hbm [thread:$0]  %s911, 32, %s7, [#allocation4]
    $region33: #{tpu_custom_call.1} parent=1 // pred_fallthru
      _
    // Predicated region
    $region34: #{tpu_custom_call.1} parent=1 // pred_check
      _
    $region35: #{tpu_custom_call.1} parent=1 // pred_check_branch
      %915 = sbr.rel (0) target = $region37
    $region36: #{tpu_custom_call.1} parent=1 // pred_region
      %916 = dma.done [#allocation4], 32
    $region37: #{tpu_custom_call.1} parent=1 // pred_fallthru
      _
    %917 = vsyncpa [#allocation4], 1

</llo_original>
